<compile_context>
chip_gen: v7x
topology: tpu7x:2x2x1
jax: 0.10.0
libtpu: 0.0.40
codegen_flags: <defaults>
</compile_context>

<pallas_src>
import math
import functools

import jax
import jax.numpy as jnp
from jax.experimental import pallas as pl
from jax.experimental.pallas import tpu as pltpu


def _mine_kernel(zc_ref, zd_ref, zds_ref, w1c_ref, w1d_ref, b1_ref, w2_ref,
                 b2_ref, mi_ref, sum0_ref, m_ref, l_ref, *,
                 n_samples, block_rows):
    """Online mi = mean(T0) - (logsumexp(T1) - log(N)) for the FF critic."""
    step = pl.program_id(0)

    @pl.when(step == 0)
    def _():
        sum0_ref[...] = jnp.zeros_like(sum0_ref)
        m_ref[...] = jnp.full_like(m_ref, -jnp.inf)
        l_ref[...] = jnp.zeros_like(l_ref)

    # ---- first layer: f32 -> bf16 cast in-register, shared z_c partial product.
    zc = zc_ref[...].astype(jnp.bfloat16)
    zd = zd_ref[...].astype(jnp.bfloat16)
    zds = zds_ref[...].astype(jnp.bfloat16)

    hc = jnp.dot(zc, w1c_ref[...], preferred_element_type=jnp.float32)   # (TB,H)
    hd = jnp.dot(zd, w1d_ref[...], preferred_element_type=jnp.float32)
    hds = jnp.dot(zds, w1d_ref[...], preferred_element_type=jnp.float32)

    b1 = b1_ref[...]                                           # (1, H) f32
    h0 = jnp.maximum(hc + hd + b1, 0.0)                        # ReLU, f32
    h1 = jnp.maximum(hc + hds + b1, 0.0)

    # ---- validity mask for the (possibly partial) last tile.
    row = jax.lax.broadcasted_iota(jnp.int32, (block_rows, 1), 0)
    valid = (step * block_rows + row) < n_samples              # (TB, 1) bool
    n_valid = jnp.minimum(n_samples - step * block_rows,
                          block_rows).astype(jnp.float32)

    w2 = w2_ref[...]                                           # (1, H) f32
    b2 = b2_ref[0, 0]                                          # scalar (SMEM)

    # ---- T0 contribution: single masked full reduce (mean finalized at end).
    h0m = jnp.where(valid, h0, 0.0)
    sum0_ref[...] = sum0_ref[...] + jnp.sum(h0m * w2) + b2 * n_valid

    # ---- online (max-stabilized) logsumexp over T1.
    t1 = jnp.sum(h1 * w2, axis=-1, keepdims=True) + b2         # (TB, 1)
    t1 = jnp.where(valid, t1, -jnp.inf)
    m_old = m_ref[...]                                         # (1, 1)
    m_new = jnp.maximum(m_old, jnp.max(t1))
    p = jnp.where(valid, jnp.exp(t1 - m_new), 0.0)
    l_ref[...] = l_ref[...] * jnp.exp(m_old - m_new) + jnp.sum(p)
    m_ref[...] = m_new

    @pl.when(step == pl.num_programs(0) - 1)
    def _():
        mean_t0 = sum0_ref[...] * (1.0 / n_samples)
        lse_t1 = m_ref[...] + jnp.log(l_ref[...])
        mi = mean_t0 - (lse_t1 - math.log(n_samples))          # (1, 1)
        mi_ref[0, 0] = mi[0, 0]


@jax.jit
def mine_forward(z_c, z_d, params, shuffle_index):
    """MINE.forward: returns (mi, 0.0, 0.0)."""
    n = z_d.shape[0]
    zc_dim = z_c.shape[-1]
    zd_dim = z_d.shape[-1]
    w1, b1, w2, b2 = params            # (ZC+ZD, H), (1, H), (H, 1), (1, 1)
    hidden = w1.shape[-1]

    # Shuffle gather in the wrapper on the raw f32 rows (cheap XLA gather;
    # replaces the old O(N^2) in-kernel one-hot matmul).
    z_d_shuf = jnp.take(z_d, shuffle_index.astype(jnp.int32), axis=0)

    # Weights are tiny: cast once here.  Activations stay f32 (cast in-kernel).
    w1c = w1[:zc_dim].astype(jnp.bfloat16)                     # rows acting on z_c
    w1d = w1[zc_dim:].astype(jnp.bfloat16)                     # rows acting on z_d
    b1f = jnp.reshape(b1, (1, hidden)).astype(jnp.float32)
    w2_row = jnp.reshape(w2, (1, hidden)).astype(jnp.float32)
    b2f = jnp.reshape(b2, (1, 1)).astype(jnp.float32)

    # Batch tile: whole batch if small, else 1024-row tiles (fits comfortably
    # in the 32 MiB default-scoped VMEM on v5e/v6e/v7x with double buffering).
    tb = n if n <= 1024 else 1024
    grid = (pl.cdiv(n, tb),)

    kernel = functools.partial(_mine_kernel, n_samples=n, block_rows=tb)

    def batch_spec(d):
        return pl.BlockSpec((tb, d), lambda i: (i, 0))

    def const_spec(a):
        return pl.BlockSpec(a.shape, lambda i: (0,) * a.ndim)

    smem = pl.BlockSpec(memory_space=pltpu.MemorySpace.SMEM)

    mi = pl.pallas_call(
        kernel,
        out_shape=jax.ShapeDtypeStruct((1, 1), jnp.float32),
        grid=grid,
        in_specs=[batch_spec(zc_dim), batch_spec(zd_dim), batch_spec(zd_dim),
                  const_spec(w1c), const_spec(w1d), const_spec(b1f),
                  const_spec(w2_row), smem],
        out_specs=smem,
        scratch_shapes=[pltpu.VMEM((1, 1), jnp.float32)] * 3,
        compiler_params=pltpu.CompilerParams(
            dimension_semantics=("arbitrary",),
            vmem_limit_bytes=32 * 1024 * 1024),
    )(z_c.astype(jnp.float32), z_d.astype(jnp.float32),
      z_d_shuf.astype(jnp.float32), w1c, w1d, b1f, w2_row, b2f)

    return mi[0, 0], 0.0, 0.0


def init_ff_params(key, dim_in, dim_hidden, dim_out):
    """Deterministic PyTorch-style (uniform +-1/sqrt(fan_in)) init."""
    k1, k2, k3, k4 = jax.random.split(key, 4)
    lim1 = 1.0 / math.sqrt(dim_in)
    lim2 = 1.0 / math.sqrt(dim_hidden)
    w1 = jax.random.uniform(k1, (dim_in, dim_hidden), jnp.float32, -lim1, lim1)
    b1 = jax.random.uniform(k2, (1, dim_hidden), jnp.float32, -lim1, lim1)
    w2 = jax.random.uniform(k3, (dim_hidden, dim_out), jnp.float32, -lim2, lim2)
    b2 = jax.random.uniform(k4, (1, dim_out), jnp.float32, -lim2, lim2)
    return w1, b1, w2, b2


if __name__ == "__main__":
    # Small shapes consistent with the module: batch=8, zc_dim=32, zd_dim=32.
    N, ZC, ZD = 8, 32, 32
    key = jax.random.PRNGKey(0)
    k_zc, k_zd, k_par, k_idx = jax.random.split(key, 4)

    z_c = jax.random.normal(k_zc, (N, ZC), jnp.float32)
    z_d = jax.random.normal(k_zd, (N, ZD), jnp.float32)
    params = init_ff_params(k_par, ZC + ZD, ZC, 1)

    # torch.randint(sample_size, (sample_size,)) -> random indices with
    # replacement; reproduced deterministically with jax.random here.
    shuffle_index = jax.random.randint(k_idx, (N,), 0, N)

    mi, a, b = mine_forward(z_c, z_d, params, shuffle_index)
    mi = jax.block_until_ready(mi)

    # Pure-JAX reference (mirrors the kernel's bf16 first-layer operands).
    w1, b1, w2, b2 = params

    def ff_ref(x):
        h = jnp.dot(x.astype(jnp.bfloat16), w1.astype(jnp.bfloat16),
                    preferred_element_type=jnp.float32)
        h = jnp.maximum(h + b1, 0.0)
        return h @ w2 + b2

    t0 = ff_ref(jnp.concatenate([z_c, z_d], -1))
    t1 = ff_ref(jnp.concatenate([z_c, z_d[shuffle_index]], -1))
    mi_ref = t0.mean() - (jax.scipy.special.logsumexp(t1.squeeze())
                          - math.log(N))
    assert jnp.allclose(mi, mi_ref, atol=1e-4, rtol=1e-4), (mi, mi_ref)

    print("KERNEL_OK")
</pallas_src>

<mosaic_0001>
module attributes {stable_mosaic.version = 11 : i64} {
  func.func @_mine_kernel(%arg0: i32, %arg1: memref<8x32xf32, #tpu.memory_space<vmem>>, %arg2: memref<8x32xf32, #tpu.memory_space<vmem>>, %arg3: memref<8x32xf32, #tpu.memory_space<vmem>>, %arg4: memref<32x32xbf16, #tpu.memory_space<vmem>>, %arg5: memref<32x32xbf16, #tpu.memory_space<vmem>>, %arg6: memref<1x32xf32, #tpu.memory_space<vmem>>, %arg7: memref<1x32xf32, #tpu.memory_space<vmem>>, %arg8: memref<1x1xf32, #tpu.memory_space<smem>>, %arg9: memref<1x1xf32, #tpu.memory_space<smem>>, %arg10: memref<1x1xf32, #tpu.memory_space<vmem>>, %arg11: memref<1x1xf32, #tpu.memory_space<vmem>>, %arg12: memref<1x1xf32, #tpu.memory_space<vmem>>) attributes {dimension_semantics = [#tpu.dimension_semantics<arbitrary>], iteration_bounds = array<i64: 1>, scalar_prefetch = 0 : i64, scratch_operands = 3 : i64, tpu.core_type = #tpu.core_type<tc>, window_params = [{transform_indices = @transform_0, window_bounds = array<i64: 8, 32>}, {transform_indices = @transform_1, window_bounds = array<i64: 8, 32>}, {transform_indices = @transform_2, window_bounds = array<i64: 8, 32>}, {pipeline_mode = #tpu.pipeline_mode<synchronous>, transform_indices = @transform_3, window_bounds = array<i64: 32, 32>}, {pipeline_mode = #tpu.pipeline_mode<synchronous>, transform_indices = @transform_4, window_bounds = array<i64: 32, 32>}, {pipeline_mode = #tpu.pipeline_mode<synchronous>, transform_indices = @transform_5, window_bounds = array<i64: 1, 32>}, {pipeline_mode = #tpu.pipeline_mode<synchronous>, transform_indices = @transform_6, window_bounds = array<i64: 1, 32>}, {transform_indices = @transform_7, window_bounds = array<i64: 1, 1>}, {transform_indices = @transform_8, window_bounds = array<i64: 1, 1>}]} {
    %c0_i32 = arith.constant 0 : i32
    %0 = arith.cmpi eq, %arg0, %c0_i32 : i32
    %1 = arith.extui %0 : i1 to i32
    %c0_i32_0 = arith.constant 0 : i32
    %2 = arith.cmpi ne, %1, %c0_i32_0 : i32
    scf.if %2 {
      %cst_47 = arith.constant 0.000000e+00 : f32
      %90 = vector.broadcast %cst_47 : f32 to vector<1x1xf32>
      %c0_48 = arith.constant 0 : index
      %c0_49 = arith.constant 0 : index
      %91 = vector.load %arg10[%c0_48, %c0_49] : memref<1x1xf32, #tpu.memory_space<vmem>>, vector<1x1xf32>
      tpu.vector_store %arg10[%c0_48, %c0_49], %90 {strides = array<i32>} : memref<1x1xf32, #tpu.memory_space<vmem>>, vector<1x1xf32>,
      %cst_50 = arith.constant 0xFF800000 : f32
      %92 = vector.broadcast %cst_50 : f32 to vector<1x1xf32>
      %c0_51 = arith.constant 0 : index
      %c0_52 = arith.constant 0 : index
      %93 = vector.load %arg11[%c0_51, %c0_52] : memref<1x1xf32, #tpu.memory_space<vmem>>, vector<1x1xf32>
      tpu.vector_store %arg11[%c0_51, %c0_52], %92 {strides = array<i32>} : memref<1x1xf32, #tpu.memory_space<vmem>>, vector<1x1xf32>,
      %cst_53 = arith.constant 0.000000e+00 : f32
      %94 = vector.broadcast %cst_53 : f32 to vector<1x1xf32>
      %c0_54 = arith.constant 0 : index
      %c0_55 = arith.constant 0 : index
      %95 = vector.load %arg12[%c0_54, %c0_55] : memref<1x1xf32, #tpu.memory_space<vmem>>, vector<1x1xf32>
      tpu.vector_store %arg12[%c0_54, %c0_55], %94 {strides = array<i32>} : memref<1x1xf32, #tpu.memory_space<vmem>>, vector<1x1xf32>,
    } else {
    }
    %c0 = arith.constant 0 : index
    %c0_1 = arith.constant 0 : index
    %3 = vector.load %arg1[%c0, %c0_1] : memref<8x32xf32, #tpu.memory_space<vmem>>, vector<8x32xf32>
    %4 = arith.truncf %3 : vector<8x32xf32> to vector<8x32xbf16>
    %c0_2 = arith.constant 0 : index
    %c0_3 = arith.constant 0 : index
    %5 = vector.load %arg2[%c0_2, %c0_3] : memref<8x32xf32, #tpu.memory_space<vmem>>, vector<8x32xf32>
    %6 = arith.truncf %5 : vector<8x32xf32> to vector<8x32xbf16>
    %c0_4 = arith.constant 0 : index
    %c0_5 = arith.constant 0 : index
    %7 = vector.load %arg3[%c0_4, %c0_5] : memref<8x32xf32, #tpu.memory_space<vmem>>, vector<8x32xf32>
    %8 = arith.truncf %7 : vector<8x32xf32> to vector<8x32xbf16>
    %c0_6 = arith.constant 0 : index
    %c0_7 = arith.constant 0 : index
    %9 = vector.load %arg4[%c0_6, %c0_7] : memref<32x32xbf16, #tpu.memory_space<vmem>>, vector<32x32xbf16>
    %cst = arith.constant dense<0.000000e+00> : vector<8x32xf32>
    %10 = tpu.matmul %4, %9, %cst {dimension_numbers = #tpu.dot_dimension_numbers<[1], [0], [0], [1], [0, 0, 1, 1], [], []>} : vector<8x32xbf16>, vector<32x32xbf16>, vector<8x32xf32> -> vector<8x32xf32>
    %c0_8 = arith.constant 0 : index
    %c0_9 = arith.constant 0 : index
    %11 = vector.load %arg5[%c0_8, %c0_9] : memref<32x32xbf16, #tpu.memory_space<vmem>>, vector<32x32xbf16>
    %cst_10 = arith.constant dense<0.000000e+00> : vector<8x32xf32>
    %12 = tpu.matmul %6, %11, %cst_10 {dimension_numbers = #tpu.dot_dimension_numbers<[1], [0], [0], [1], [0, 0, 1, 1], [], []>} : vector<8x32xbf16>, vector<32x32xbf16>, vector<8x32xf32> -> vector<8x32xf32>
    %c0_11 = arith.constant 0 : index
    %c0_12 = arith.constant 0 : index
    %13 = vector.load %arg5[%c0_11, %c0_12] : memref<32x32xbf16, #tpu.memory_space<vmem>>, vector<32x32xbf16>
    %cst_13 = arith.constant dense<0.000000e+00> : vector<8x32xf32>
    %14 = tpu.matmul %8, %13, %cst_13 {dimension_numbers = #tpu.dot_dimension_numbers<[1], [0], [0], [1], [0, 0, 1, 1], [], []>} : vector<8x32xbf16>, vector<32x32xbf16>, vector<8x32xf32> -> vector<8x32xf32>
    %c0_14 = arith.constant 0 : index
    %c0_15 = arith.constant 0 : index
    %15 = vector.load %arg6[%c0_14, %c0_15] : memref<1x32xf32, #tpu.memory_space<vmem>>, vector<1x32xf32>
    %16 = arith.addf %10, %12 : vector<8x32xf32>
    %17 = vector.broadcast %15 : vector<1x32xf32> to vector<8x32xf32>
    %18 = arith.addf %16, %17 : vector<8x32xf32>
    %cst_16 = arith.constant 0.000000e+00 : f32
    %19 = vector.broadcast %cst_16 : f32 to vector<8x32xf32>
    %20 = arith.maximumf %18, %19 : vector<8x32xf32>
    %21 = arith.addf %10, %14 : vector<8x32xf32>
    %22 = vector.broadcast %15 : vector<1x32xf32> to vector<8x32xf32>
    %23 = arith.addf %21, %22 : vector<8x32xf32>
    %cst_17 = arith.constant 0.000000e+00 : f32
    %24 = vector.broadcast %cst_17 : f32 to vector<8x32xf32>
    %25 = arith.maximumf %23, %24 : vector<8x32xf32>
    %26 = tpu.iota {dimensions = array<i32: 0>} : vector<8x1xi32>
    %c8_i32 = arith.constant 8 : i32
    %27 = arith.muli %arg0, %c8_i32 : i32
    %28 = vector.broadcast %27 : i32 to vector<8x1xi32>
    %29 = arith.addi %28, %26 : vector<8x1xi32>
    %c8_i32_18 = arith.constant 8 : i32
    %30 = vector.broadcast %c8_i32_18 : i32 to vector<8x1xi32>
    %31 = arith.cmpi slt, %29, %30 : vector<8x1xi32>
    %c8_i32_19 = arith.constant 8 : i32
    %32 = arith.muli %arg0, %c8_i32_19 : i32
    %c8_i32_20 = arith.constant 8 : i32
    %33 = arith.subi %c8_i32_20, %32 : i32
    %c8_i32_21 = arith.constant 8 : i32
    %34 = arith.minsi %33, %c8_i32_21 : i32
    %35 = arith.sitofp %34 : i32 to f32
    %c0_22 = arith.constant 0 : index
    %c0_23 = arith.constant 0 : index
    %36 = vector.load %arg7[%c0_22, %c0_23] : memref<1x32xf32, #tpu.memory_space<vmem>>, vector<1x32xf32>
    %c0_24 = arith.constant 0 : index
    %c0_25 = arith.constant 0 : index
    %37 = memref.load %arg8[%c0_24, %c0_25] : memref<1x1xf32, #tpu.memory_space<smem>>
    %cst_26 = arith.constant 0.000000e+00 : f32
    %38 = vector.shape_cast %31 : vector<8x1xi1> to vector<8x1xi1>
    %39 = vector.broadcast %38 : vector<8x1xi1> to vector<8x32xi1>
    %40 = vector.broadcast %cst_26 : f32 to vector<8x32xf32>
    %41 = arith.select %39, %20, %40 : vector<8x32xi1>, vector<8x32xf32>
    %c0_27 = arith.constant 0 : index
    %c0_28 = arith.constant 0 : index
    %42 = vector.load %arg10[%c0_27, %c0_28] : memref<1x1xf32, #tpu.memory_space<vmem>>, vector<1x1xf32>
    %43 = vector.broadcast %36 : vector<1x32xf32> to vector<8x32xf32>
    %44 = arith.mulf %41, %43 : vector<8x32xf32>
    %45 = vector.shape_cast %44 : vector<8x32xf32> to vector<1x8x32xf32>
    %cst_29 = arith.constant dense<0.000000e+00> : vector<1xf32>
    %46 = vector.multi_reduction <add>, %45, %cst_29 [1, 2] : vector<1x8x32xf32> to vector<1xf32>
    %47 = vector.shape_cast %46 : vector<1xf32> to vector<1x1x1xf32>
    %48 = vector.extract %47[0, 0, 0] : f32 from vector<1x1x1xf32>
    %49 = vector.broadcast %48 : f32 to vector<1x1xf32>
    %50 = arith.addf %42, %49 : vector<1x1xf32>
    %51 = arith.mulf %37, %35 : f32
    %52 = vector.broadcast %51 : f32 to vector<1x1xf32>
    %53 = arith.addf %50, %52 : vector<1x1xf32>
    %c0_30 = arith.constant 0 : index
    %c0_31 = arith.constant 0 : index
    %54 = vector.load %arg10[%c0_30, %c0_31] : memref<1x1xf32, #tpu.memory_space<vmem>>, vector<1x1xf32>
    tpu.vector_store %arg10[%c0_30, %c0_31], %53 {strides = array<i32>} : memref<1x1xf32, #tpu.memory_space<vmem>>, vector<1x1xf32>,
    %55 = vector.broadcast %36 : vector<1x32xf32> to vector<8x32xf32>
    %56 = arith.mulf %25, %55 : vector<8x32xf32>
    %cst_32 = arith.constant dense<0.000000e+00> : vector<8xf32>
    %57 = vector.multi_reduction <add>, %56, %cst_32 [1] : vector<8x32xf32> to vector<8xf32>
    %58 = vector.shape_cast %57 : vector<8xf32> to vector<8x1xf32>
    %59 = vector.broadcast %37 : f32 to vector<8x1xf32>
    %60 = arith.addf %58, %59 : vector<8x1xf32>
    %cst_33 = arith.constant 0xFF800000 : f32
    %61 = vector.broadcast %cst_33 : f32 to vector<8x1xf32>
    %62 = arith.select %31, %60, %61 : vector<8x1xi1>, vector<8x1xf32>
    %c0_34 = arith.constant 0 : index
    %c0_35 = arith.constant 0 : index
    %63 = vector.load %arg11[%c0_34, %c0_35] : memref<1x1xf32, #tpu.memory_space<vmem>>, vector<1x1xf32>
    %64 = vector.shape_cast %62 : vector<8x1xf32> to vector<1x8x1xf32>
    %cst_36 = arith.constant dense<0xFF800000> : vector<1xf32>
    %65 = vector.multi_reduction <maximumf>, %64, %cst_36 [1, 2] : vector<1x8x1xf32> to vector<1xf32>
    %66 = vector.shape_cast %65 : vector<1xf32> to vector<1x1x1xf32>
    %67 = vector.extract %66[0, 0, 0] : f32 from vector<1x1x1xf32>
    %68 = vector.broadcast %67 : f32 to vector<1x1xf32>
    %69 = arith.maximumf %63, %68 : vector<1x1xf32>
    %70 = vector.broadcast %69 : vector<1x1xf32> to vector<8x1xf32>
    %71 = arith.subf %62, %70 : vector<8x1xf32>
    %72 = math.exp %71 : vector<8x1xf32>
    %cst_37 = arith.constant 0.000000e+00 : f32
    %73 = vector.broadcast %cst_37 : f32 to vector<8x1xf32>
    %74 = arith.select %31, %72, %73 : vector<8x1xi1>, vector<8x1xf32>
    %c0_38 = arith.constant 0 : index
    %c0_39 = arith.constant 0 : index
    %75 = vector.load %arg12[%c0_38, %c0_39] : memref<1x1xf32, #tpu.memory_space<vmem>>, vector<1x1xf32>
    %76 = arith.subf %63, %69 : vector<1x1xf32>
    %77 = math.exp %76 : vector<1x1xf32>
    %78 = arith.mulf %75, %77 : vector<1x1xf32>
    %79 = vector.shape_cast %74 : vector<8x1xf32> to vector<1x8x1xf32>
    %cst_40 = arith.constant dense<0.000000e+00> : vector<1xf32>
    %80 = vector.multi_reduction <add>, %79, %cst_40 [1, 2] : vector<1x8x1xf32> to vector<1xf32>
    %81 = vector.shape_cast %80 : vector<1xf32> to vector<1x1x1xf32>
    %82 = vector.extract %81[0, 0, 0] : f32 from vector<1x1x1xf32>
    %83 = vector.broadcast %82 : f32 to vector<1x1xf32>
    %84 = arith.addf %78, %83 : vector<1x1xf32>
    %c0_41 = arith.constant 0 : index
    %c0_42 = arith.constant 0 : index
    %85 = vector.load %arg12[%c0_41, %c0_42] : memref<1x1xf32, #tpu.memory_space<vmem>>, vector<1x1xf32>
    tpu.vector_store %arg12[%c0_41, %c0_42], %84 {strides = array<i32>} : memref<1x1xf32, #tpu.memory_space<vmem>>, vector<1x1xf32>,
    %c0_43 = arith.constant 0 : index
    %c0_44 = arith.constant 0 : index
    %86 = vector.load %arg11[%c0_43, %c0_44] : memref<1x1xf32, #tpu.memory_space<vmem>>, vector<1x1xf32>
    tpu.vector_store %arg11[%c0_43, %c0_44], %69 {strides = array<i32>} : memref<1x1xf32, #tpu.memory_space<vmem>>, vector<1x1xf32>,
    %c0_i32_45 = arith.constant 0 : i32
    %87 = arith.cmpi eq, %arg0, %c0_i32_45 : i32
    %88 = arith.extui %87 : i1 to i32
    %c0_i32_46 = arith.constant 0 : i32
    %89 = arith.cmpi ne, %88, %c0_i32_46 : i32
    scf.if %89 {
      %c0_47 = arith.constant 0 : index
      %c0_48 = arith.constant 0 : index
      %90 = vector.load %arg10[%c0_47, %c0_48] : memref<1x1xf32, #tpu.memory_space<vmem>>, vector<1x1xf32>
      %cst_49 = arith.constant 1.250000e-01 : f32
      %91 = vector.broadcast %cst_49 : f32 to vector<1x1xf32>
      %92 = arith.mulf %90, %91 : vector<1x1xf32>
      %c0_50 = arith.constant 0 : index
      %c0_51 = arith.constant 0 : index
      %93 = vector.load %arg11[%c0_50, %c0_51] : memref<1x1xf32, #tpu.memory_space<vmem>>, vector<1x1xf32>
      %c0_52 = arith.constant 0 : index
      %c0_53 = arith.constant 0 : index
      %94 = vector.load %arg12[%c0_52, %c0_53] : memref<1x1xf32, #tpu.memory_space<vmem>>, vector<1x1xf32>
      %95 = math.log %94 : vector<1x1xf32>
      %96 = arith.addf %93, %95 : vector<1x1xf32>
      %cst_54 = arith.constant 2.07944155 : f32
      %97 = vector.broadcast %cst_54 : f32 to vector<1x1xf32>
      %98 = arith.subf %96, %97 : vector<1x1xf32>
      %99 = arith.subf %92, %98 : vector<1x1xf32>
      %100 = vector.extract %99[0, 0] : f32 from vector<1x1xf32>
      %c0_55 = arith.constant 0 : index
      %c0_56 = arith.constant 0 : index
      %101 = memref.load %arg9[%c0_55, %c0_56] : memref<1x1xf32, #tpu.memory_space<smem>>
      memref.store %100, %arg9[%c0_55, %c0_56] : memref<1x1xf32, #tpu.memory_space<smem>>
    } else {
    }
    return
  }
  func.func @transform_0(%arg0: i32) -> (i32, i32) {
    %c0_i32 = arith.constant 0 : i32
    %c0_i32_0 = arith.constant 0 : i32
    return %arg0, %c0_i32 : i32, i32
  }
  func.func @transform_1(%arg0: i32) -> (i32, i32) {
    %c0_i32 = arith.constant 0 : i32
    %c0_i32_0 = arith.constant 0 : i32
    return %arg0, %c0_i32 : i32, i32
  }
  func.func @transform_2(%arg0: i32) -> (i32, i32) {
    %c0_i32 = arith.constant 0 : i32
    %c0_i32_0 = arith.constant 0 : i32
    return %arg0, %c0_i32 : i32, i32
  }
  func.func @transform_3(%arg0: i32) -> (i32, i32) {
    %c0_i32 = arith.constant 0 : i32
    %c0_i32_0 = arith.constant 0 : i32
    %c0_i32_1 = arith.constant 0 : i32
    return %c0_i32, %c0_i32_0 : i32, i32
  }
  func.func @transform_4(%arg0: i32) -> (i32, i32) {
    %c0_i32 = arith.constant 0 : i32
    %c0_i32_0 = arith.constant 0 : i32
    %c0_i32_1 = arith.constant 0 : i32
    return %c0_i32, %c0_i32_0 : i32, i32
  }
  func.func @transform_5(%arg0: i32) -> (i32, i32) {
    %c0_i32 = arith.constant 0 : i32
    %c0_i32_0 = arith.constant 0 : i32
    %c0_i32_1 = arith.constant 0 : i32
    return %c0_i32, %c0_i32_0 : i32, i32
  }
  func.func @transform_6(%arg0: i32) -> (i32, i32) {
    %c0_i32 = arith.constant 0 : i32
    %c0_i32_0 = arith.constant 0 : i32
    %c0_i32_1 = arith.constant 0 : i32
    return %c0_i32, %c0_i32_0 : i32, i32
  }
  func.func @transform_7(%arg0: i32) -> (i32, i32) {
    %c0_i32 = arith.constant 0 : i32
    %c0_i32_0 = arith.constant 0 : i32
    %c0_i32_1 = arith.constant 0 : i32
    return %c0_i32, %c0_i32_0 : i32, i32
  }
  func.func @transform_8(%arg0: i32) -> (i32, i32) {
    %c0_i32 = arith.constant 0 : i32
    %c0_i32_0 = arith.constant 0 : i32
    %c0_i32_1 = arith.constant 0 : i32
    return %c0_i32, %c0_i32_0 : i32, i32
  }
}

</mosaic_0001>

<llo_original>
// kernel: mine_forward.1
$region0: #{mine_forward.1}
  #allocation0 [shape = 'u32[]', space=smem, size = 0x4, offset = 0x4, fixed_abs, tag = 'smem constant byte address 0x4 - core index']
  #allocation1 [shape = 'u32[144,128]{1,0:T(1,128)}', space=vmem, size = 0x12000, scoped, tag = 'internal scratch']
  #allocation2 [shape = 'f32[1,1]{1,0:T(1,128)}', space=vmem, size = 0x200, scoped, tag = 'scratch operand']
  #allocation3 [shape = 'f32[1,1]{1,0:T(1,128)}', space=vmem, size = 0x200, scoped, tag = 'scratch operand']
  #allocation4 [shape = 'f32[1,1]{1,0:T(1,128)}', space=vmem, size = 0x200, scoped, tag = 'scratch operand']
  #allocation5 [shape = 'f32[1,1]{1,0:T(1,128)S(6)}', space=smem, size = 0x200, scoped, tag = 'scoped memory for mine_forward.1']
  %s0 = inlined_call_operand.vmem [shape: f32[8,32], index: 0, kind: input, shape index: {}]
  %s1 = inlined_call_operand.vmem [shape: f32[8,32], index: 1, kind: input, shape index: {}]
  %s2 = inlined_call_operand.vmem [shape: f32[8,32], index: 2, kind: input, shape index: {}]
  %s3 = inlined_call_operand.vmem [shape: bf16[32,32], index: 3, kind: input, shape index: {}]
  %s4 = inlined_call_operand.vmem [shape: bf16[32,32], index: 4, kind: input, shape index: {}]
  %s5 = inlined_call_operand.vmem [shape: f32[1,32], index: 5, kind: input, shape index: {}]
  %s6 = inlined_call_operand.vmem [shape: f32[1,32], index: 6, kind: input, shape index: {}]
  %s7 = inlined_call_operand.<no memory space> [shape: f32[1,1], index: 7, kind: input, shape index: {}]
  %s8 = inlined_call_operand.hbm [shape: f32[1,1], index: 8, kind: output, shape index: {}]
  %s9 = sld [smem:[#allocation0]]
  $region50: #{mine_forward.1} parent=0
    _
  %s11 = ssub.s32 1, %s9
  %s12 = scalar_select 0, %s11, %s9
  %13 = sst [smem:[#allocation5]] %s7
  $region1: #{mine_forward.1} parent=0
    #allocation6 [shape = 'u8[512]{0}', space=smem, size = 0x200, scoped, tag = 'output window, operand 0, single buffered']
    #allocation7 [shape = 's32[1]{0}', space=sflag, size = 0x4, scoped, tag = 'scoped memory for mine_forward.1']
    %14 = vsyncpa [#allocation7], 0
    // Predicated region
    $region2: #{mine_forward.1} parent=1 // pred_check
      _
    $region3: #{mine_forward.1} parent=1 // pred_check_branch
      %16 = sbr.rel (0) target = $region5
    $region4: #{mine_forward.1} parent=1 // pred_region
      _
    $region5: #{mine_forward.1} parent=1 // pred_fallthru
      _
    // Predicated region
    $region6: #{mine_forward.1} parent=1 // pred_check
      _
    $region7: #{mine_forward.1} parent=1 // pred_check_branch
      %18 = sbr.rel (0) target = $region9
    $region8: #{mine_forward.1} parent=1 // pred_region
      _
    $region9: #{mine_forward.1} parent=1 // pred_fallthru
      _
    // Predicated region
    $region10: #{mine_forward.1} parent=1 // pred_check
      _
    $region11: #{mine_forward.1} parent=1 // pred_check_branch
      %20 = sbr.rel (0) target = $region13
    $region12: #{mine_forward.1} parent=1 // pred_region
      _
    $region13: #{mine_forward.1} parent=1 // pred_fallthru
      _
    // Predicated region
    $region14: #{mine_forward.1} parent=1 // pred_check
      _
    $region15: #{mine_forward.1} parent=1 // pred_check_branch
      %22 = sbr.rel (0) target = $region17
    $region16: #{mine_forward.1} parent=1 // pred_region
      _
    $region17: #{mine_forward.1} parent=1 // pred_fallthru
      _
    // Predicated region
    $region18: #{mine_forward.1} parent=1 // pred_check
      _
    $region19: #{mine_forward.1} parent=1 // pred_check_branch
      %24 = sbr.rel (0) target = $region21
    $region20: #{mine_forward.1} parent=1 // pred_region
      _
    $region21: #{mine_forward.1} parent=1 // pred_fallthru
      _
    // Predicated region
    $region22: #{mine_forward.1} parent=1 // pred_check
      _
    $region23: #{mine_forward.1} parent=1 // pred_check_branch
      %26 = sbr.rel (0) target = $region25
    $region24: #{mine_forward.1} parent=1 // pred_region
      _
    $region25: #{mine_forward.1} parent=1 // pred_fallthru
      _
    // Predicated region
    $region26: #{mine_forward.1} parent=1 // pred_check
      _
    $region27: #{mine_forward.1} parent=1 // pred_check_branch
      %28 = sbr.rel (0) target = $region29
    $region28: #{mine_forward.1} parent=1 // pred_region
      _
    $region29: #{mine_forward.1} parent=1 // pred_fallthru
      _
    // Predicated region
    $region30: #{mine_forward.1} parent=1 // pred_check
      _
    $region31: #{mine_forward.1} parent=1 // pred_check_branch
      %30 = sbr.rel (0) target = $region33
    $region32: #{mine_forward.1} parent=1 // pred_region
      _
    $region33: #{mine_forward.1} parent=1 // pred_fallthru
      _
    %p32 = scmp.eq.s32.totalorder 0, 0
    // Predicated region
    $region34: #{mine_forward.1} parent=1 // pred_check
      %p33 = pneg %p32
    $region35: #{mine_forward.1} parent=1 // pred_check_branch
      %35 = sbr.rel (%p33) target = $region37
    $region36: #{mine_forward.1} parent=1 // pred_region
      %vm36 = vcmask 0
      %37 = vst.msk [vmem:[#allocation2] sm:$0x1] %vm36, 0.0
      %38 = vst.msk [vmem:[#allocation3] sm:$0x1] %vm36, -inf
      %39 = vst.msk [vmem:[#allocation4] sm:$0x1] %vm36, 0.0
    $region37: #{mine_forward.1} parent=1 // pred_fallthru
      _
    %v40 = vld [vmem:[%s0] sm:$0xff]
    %v41 = vpack.c.bf16 %v40, %v40
    %v42 = vld [vmem:[%s1] sm:$0xff]
    %v43 = vpack.c.bf16 %v42, %v42
    %v44 = vld [vmem:[%s2] sm:$0xff]
    %v45 = vpack.c.bf16 %v44, %v44
    %v46 = vld [vmem:[%s3] sm:$0xf]
    %v47 = vld [vmem:[%s3 + $0x4] sm:$0xf]
    %v48 = vld [vmem:[%s3 + $0x8] sm:$0xf]
    %v49 = vld [vmem:[%s3 + $0xc] sm:$0xf]
    %v54 = vunpack.c.l.b16 %v46
    %v55 = vunpack.c.l.b16 %v47
    %v56 = vunpack.c.l.b16 %v48
    %v57 = vunpack.c.l.b16 %v49
    %v58 = vpack.c.b16 %v55, %v54
    %v59 = vpack.c.b16 %v57, %v56
    %vm62 = vcmask 261120
    %v64 = vsel %vm62, %v41, 0
    %66 = vmatprep.subr.bf16.mxu0 0
    %67 = vmatpush1.bf16.msra.mxu0 %v58
    %68 = vmatprep.subr.bf16.mxu0 0
    %69 = vmatpush1.bf16.msra.mxu0 %v59
    %70 = vmatprep.subr.bf16.mxu0 0
    %71 = vmatpush1.bf16.msra.mxu0 0
    %72 = vmatprep.subr.bf16.mxu0 0
    %73 = vmatpush1.bf16.msra.mxu0 0
    %74 = vmatprep.subr.bf16.mxu0 0
    %75 = vmatpush1.bf16.msra.mxu0 0
    %76 = vmatprep.subr.bf16.mxu0 0
    %77 = vmatpush1.bf16.msra.mxu0 0
    %78 = vmatprep.subr.bf16.mxu0 0
    %79 = vmatpush1.bf16.msra.mxu0 0
    %80 = vmatprep.subr.bf16.mxu0 0
    %81 = vmatpush1.bf16.msra.mxu0 0
    %82 = vmatprep.subr.bf16.mxu0 0
    %83 = vmatpush1.bf16.msra.mxu0 0
    %84 = vmatprep.subr.bf16.mxu0 0
    %85 = vmatpush1.bf16.msra.mxu0 0
    %86 = vmatprep.subr.bf16.mxu0 0
    %87 = vmatpush1.bf16.msra.mxu0 0
    %88 = vmatprep.subr.bf16.mxu0 0
    %89 = vmatpush1.bf16.msra.mxu0 0
    %90 = vmatprep.subr.bf16.mxu0 0
    %91 = vmatpush1.bf16.msra.mxu0 0
    %92 = vmatprep.subr.bf16.mxu0 0
    %93 = vmatpush1.bf16.msra.mxu0 0
    %94 = vmatprep.subr.bf16.mxu0 0
    %95 = vmatpush1.bf16.msra.mxu0 0
    %96 = vmatprep.subr.bf16.mxu0 0
    %97 = vmatpush1.bf16.msra.mxu0 0
    %98 = vmatprep.mubr.bf16.mxu0 0
    %99 = vmatmul.mubr.bf16.gmra.mrb[0].mxu0 %v64
    %v100 = vpop.f32.mrb[0].mxu0
    %v101 = vadd.f32 0.0, %v100
    %v102 = vpop.f32.mrb[0].mxu0
    %v103 = vpop.f32.mrb[0].mxu0
    %v104 = vpop.f32.mrb[0].mxu0
    %105 = vdwg.mxu0
    %v106 = vld [vmem:[%s4] sm:$0xf]
    %v107 = vld [vmem:[%s4 + $0x4] sm:$0xf]
    %v108 = vld [vmem:[%s4 + $0x8] sm:$0xf]
    %v109 = vld [vmem:[%s4 + $0xc] sm:$0xf]
    %v114 = vunpack.c.l.b16 %v106
    %v115 = vunpack.c.l.b16 %v107
    %v116 = vunpack.c.l.b16 %v108
    %v117 = vunpack.c.l.b16 %v109
    %v118 = vpack.c.b16 %v115, %v114
    %v119 = vpack.c.b16 %v117, %v116
    %v123 = vsel %vm62, %v43, 0
    %125 = vmatprep.subr.bf16.mxu0 0
    %126 = vmatpush1.bf16.msra.mxu0 %v118
    %127 = vmatprep.subr.bf16.mxu0 0
    %128 = vmatpush1.bf16.msra.mxu0 %v119
    %129 = vmatprep.subr.bf16.mxu0 0
    %130 = vmatpush1.bf16.msra.mxu0 0
    %131 = vmatprep.subr.bf16.mxu0 0
    %132 = vmatpush1.bf16.msra.mxu0 0
    %133 = vmatprep.subr.bf16.mxu0 0
    %134 = vmatpush1.bf16.msra.mxu0 0
    %135 = vmatprep.subr.bf16.mxu0 0
    %136 = vmatpush1.bf16.msra.mxu0 0
    %137 = vmatprep.subr.bf16.mxu0 0
    %138 = vmatpush1.bf16.msra.mxu0 0
    %139 = vmatprep.subr.bf16.mxu0 0
    %140 = vmatpush1.bf16.msra.mxu0 0
    %141 = vmatprep.subr.bf16.mxu0 0
    %142 = vmatpush1.bf16.msra.mxu0 0
    %143 = vmatprep.subr.bf16.mxu0 0
    %144 = vmatpush1.bf16.msra.mxu0 0
    %145 = vmatprep.subr.bf16.mxu0 0
    %146 = vmatpush1.bf16.msra.mxu0 0
    %147 = vmatprep.subr.bf16.mxu0 0
    %148 = vmatpush1.bf16.msra.mxu0 0
    %149 = vmatprep.subr.bf16.mxu0 0
    %150 = vmatpush1.bf16.msra.mxu0 0
    %151 = vmatprep.subr.bf16.mxu0 0
    %152 = vmatpush1.bf16.msra.mxu0 0
    %153 = vmatprep.subr.bf16.mxu0 0
    %154 = vmatpush1.bf16.msra.mxu0 0
    %155 = vmatprep.subr.bf16.mxu0 0
    %156 = vmatpush1.bf16.msra.mxu0 0
    %157 = vmatprep.mubr.bf16.mxu0 0
    %158 = vmatmul.mubr.bf16.gmra.mrb[0].mxu0 %v123
    %v159 = vpop.f32.mrb[0].mxu0
    %v160 = vadd.f32 0.0, %v159
    %v161 = vpop.f32.mrb[0].mxu0
    %v162 = vpop.f32.mrb[0].mxu0
    %v163 = vpop.f32.mrb[0].mxu0
    %164 = vdwg.mxu0
    %v166 = vsel %vm62, %v45, 0
    %168 = vmatprep.subr.bf16.mxu0 0
    %169 = vmatpush1.bf16.msra.mxu0 %v118
    %170 = vmatprep.subr.bf16.mxu0 0
    %171 = vmatpush1.bf16.msra.mxu0 %v119
    %172 = vmatprep.subr.bf16.mxu0 0
    %173 = vmatpush1.bf16.msra.mxu0 0
    %174 = vmatprep.subr.bf16.mxu0 0
    %175 = vmatpush1.bf16.msra.mxu0 0
    %176 = vmatprep.subr.bf16.mxu0 0
    %177 = vmatpush1.bf16.msra.mxu0 0
    %178 = vmatprep.subr.bf16.mxu0 0
    %179 = vmatpush1.bf16.msra.mxu0 0
    %180 = vmatprep.subr.bf16.mxu0 0
    %181 = vmatpush1.bf16.msra.mxu0 0
    %182 = vmatprep.subr.bf16.mxu0 0
    %183 = vmatpush1.bf16.msra.mxu0 0
    %184 = vmatprep.subr.bf16.mxu0 0
    %185 = vmatpush1.bf16.msra.mxu0 0
    %186 = vmatprep.subr.bf16.mxu0 0
    %187 = vmatpush1.bf16.msra.mxu0 0
    %188 = vmatprep.subr.bf16.mxu0 0
    %189 = vmatpush1.bf16.msra.mxu0 0
    %190 = vmatprep.subr.bf16.mxu0 0
    %191 = vmatpush1.bf16.msra.mxu0 0
    %192 = vmatprep.subr.bf16.mxu0 0
    %193 = vmatpush1.bf16.msra.mxu0 0
    %194 = vmatprep.subr.bf16.mxu0 0
    %195 = vmatpush1.bf16.msra.mxu0 0
    %196 = vmatprep.subr.bf16.mxu0 0
    %197 = vmatpush1.bf16.msra.mxu0 0
    %198 = vmatprep.subr.bf16.mxu0 0
    %199 = vmatpush1.bf16.msra.mxu0 0
    %200 = vmatprep.mubr.bf16.mxu0 0
    %201 = vmatmul.mubr.bf16.gmra.mrb[0].mxu0 %v166
    %v202 = vpop.f32.mrb[0].mxu0
    %v203 = vadd.f32 0.0, %v202
    %v204 = vpop.f32.mrb[0].mxu0
    %v205 = vpop.f32.mrb[0].mxu0
    %v206 = vpop.f32.mrb[0].mxu0
    %207 = vdwg.mxu0
    %v208 = vld [vmem:[%s5] sm:$0x1]
    %v209 = vadd.f32 %v101, %v160
    %v211 = vlaneseq
    %v212 = vshrl.u32 %v211, 7
    %v213 = vsub.s32 0, %v212
    %v214 = vrot.slane %v208, %v213
    %v216 = vadd.f32 %v209, %v214
    %v217 = vmax.f32 %v216, 0.0
    %v218 = vadd.f32 %v101, %v203
    %v219 = vadd.f32 %v218, %v214
    %v220 = vmax.f32 %v219, 0.0
    %v221 = vlaneseq
    %v222 = vshrl.u32 %v221, 7
    %s223 = smul.u32 0, 8
    %v224 = vstv %s223
    %v225 = vadd.s32 %v224, %v222
    %vm226 = vcmp.lt.s32.totalorder %v225, 8
    %s227 = ssub.s32 8, %s223
    %p228 = scmp.lt.s32.totalorder %s227, 8
    %s229 = scalar_select %p228, %s227, 8
    %s230 = scvt.s32.f32 %s229
    %v231 = vld [vmem:[%s6] sm:$0x1]
    %s232 = sld [smem:[#allocation5]]
    %v233 = vsel %vm226, 1, 0
    %vm234 = vcmp.eq.s32.totalorder %v233, 1
    %v235 = vsel %vm234, %v217, 0.0
    %v236 = vld [vmem:[#allocation2] sm:$0x1]
    %v238 = vlaneseq
    %v239 = vshrl.u32 %v238, 7
    %v240 = vsub.s32 0, %v239
    %v241 = vrot.slane %v231, %v240
    %v243 = vmul.f32 %v235, %v241
    %v244 = vsel %vm62, %v243, 0.0
    %245 = vadd.xlane.f32.xlu0 %v244
    %v246 = vpop.xlane.xlu0 %245
    %v247 = vrot.slane %v246, 4
    %v248 = vadd.f32 %v246, %v247
    %v249 = vrot.slane %v248, 2
    %v250 = vadd.f32 %v248, %v249
    %v251 = vrot.slane %v250, 1
    %v252 = vadd.f32 %v250, %v251
    %s253 = vtos %v252
    %v254 = vstv %s253
    %v255 = vadd.f32 %v236, %v254
    %s256 = smul.f32 %s232, %s230
    %v257 = vstv %s256
    %v258 = vadd.f32 %v255, %v257
    %vm259 = vcmask 0
    %260 = vst.msk [vmem:[#allocation2] sm:$0x1] %vm259, %v258
    %v261 = vmul.f32 %v220, %v241
    %v262 = vsel %vm62, %v261, 0.0
    %263 = vadd.xlane.f32.xlu0 %v262
    %v264 = vpop.xlane.xlu0 %263
    %v265 = vstv %s232
    %v266 = vadd.f32 %v264, %v265
    %v267 = vsel %vm226, %v266, -inf
    %v268 = vld [vmem:[#allocation3] sm:$0x1]
    %v269 = vrot.slane %v267, 4
    %v270 = vmax.f32 %v267, %v269
    %v271 = vrot.slane %v270, 2
    %v272 = vmax.f32 %v270, %v271
    %v273 = vrot.slane %v272, 1
    %v274 = vmax.f32 %v272, %v273
    %s275 = vtos %v274
    %v276 = vstv %s275
    %v277 = vmax.f32 %v268, %v276
    %v279 = vlaneseq
    %v280 = vshrl.u32 %v279, 7
    %v281 = vsub.s32 0, %v280
    %v282 = vrot.slane %v277, %v281
    %v284 = vsub.f32 %v267, %v282
    %v285 = vmul.f32 %v284, 1.442695
    %v286 = vpow.pop %v285
    %v287 = vsel %vm226, %v286, 0.0
    %v288 = vld [vmem:[#allocation4] sm:$0x1]
    %v289 = vsub.f32 %v268, %v277
    %v290 = vmul.f32 %v289, 1.442695
    %v291 = vpow.pop %v290
    %v292 = vmul.f32 %v288, %v291
    %vm293 = vcmask 7168
    %v294 = vsel %vm293, %v287, 0.0
    %295 = vadd.xlane.f32.xlu0 %v294
    %v296 = vpop.xlane.xlu0 %295
    %v297 = vrot.slane %v296, 4
    %v298 = vadd.f32 %v296, %v297
    %v299 = vrot.slane %v298, 2
    %v300 = vadd.f32 %v298, %v299
    %v301 = vrot.slane %v300, 1
    %v302 = vadd.f32 %v300, %v301
    %s303 = vtos %v302
    %v304 = vstv %s303
    %v305 = vadd.f32 %v292, %v304
    %306 = vst.msk [vmem:[#allocation4] sm:$0x1] %vm259, %v305
    %307 = vst.msk [vmem:[#allocation3] sm:$0x1] %vm259, %v277
    // Predicated region
    $region38: #{mine_forward.1} parent=1 // pred_check
      %p308 = pneg %p32
    $region39: #{mine_forward.1} parent=1 // pred_check_branch
      %310 = sbr.rel (%p308) target = $region41
    $region40: #{mine_forward.1} parent=1 // pred_region
      %v311 = vld [vmem:[#allocation2] sm:$0x1]
      %v312 = vmul.f32 %v311, 0.125
      %v313 = vld [vmem:[#allocation3] sm:$0x1]
      %v314 = vld [vmem:[#allocation4] sm:$0x1]
      %v315 = vlog2.pop %v314
      %v316 = vmul.f32 %v315, 0.6931472
      %v317 = vadd.f32 %v313, %v316
      %v318 = vsub.f32 %v317, 2.0794415
      %v319 = vsub.f32 %v312, %v318
      %s320 = vtos %v319
      %s321 = scalar_lea.smem [#allocation6], 0
      %322 = sst [smem:[%s321]] %s320
    $region41: #{mine_forward.1} parent=1 // pred_fallthru
      _
    // Predicated region
    $region42: #{mine_forward.1} parent=1 // pred_check
      _
    $region43: #{mine_forward.1} parent=1 // pred_check_branch
      %324 = sbr.rel (0) target = $region45
    $region44: #{mine_forward.1} parent=1 // pred_region
      %s326 = ssub.s32 16, 16
      %327 = vsyncadd [#allocation7], %s326
      %330 = dma.smem_to_hbm [#allocation6], 16, %s8, [#allocation7]
    $region45: #{mine_forward.1} parent=1 // pred_fallthru
      _
    // Predicated region
    $region46: #{mine_forward.1} parent=1 // pred_check
      _
    $region47: #{mine_forward.1} parent=1 // pred_check_branch
      %332 = sbr.rel (0) target = $region49
    $region48: #{mine_forward.1} parent=1 // pred_region
      %333 = dma.done [#allocation7], 16
    $region49: #{mine_forward.1} parent=1 // pred_fallthru
      _
    %334 = sfence
    %335 = vsyncpa [#allocation7], 1

</llo_original>
